<compile_context>
chip_gen: v6e
topology: v6e:2x2x1
jax: 0.10.0
libtpu: 0.0.40
codegen_flags: <defaults>
</compile_context>

<pallas_src>
import jax
import jax.numpy as jnp
from jax import lax
from jax.experimental import pallas as pl
from jax.experimental.pallas import tpu as pltpu

HIDDEN = 14


def _round_up(a, b):
    return (a + b - 1) // b * b


def _make_kernel(H, HP, TN):
    """Kernel closure over static dims (H real hidden, HP padded, TN node tile)."""

    def kernel(ip_edge_ref, col_ref, eT_ref, ip_nodes_ref, wm_ref, wv_ref,
               out_ref, acc_ref):
        i = pl.program_id(0)          # node tile
        k = pl.program_id(1)          # edge tile

        @pl.when(k == 0)
        def _init():
            acc_ref[...] = jnp.zeros_like(acc_ref)

        # Resident weight slabs; static sublane-aligned slices.
        w1e_T = wm_ref[0 * HP:1 * HP, :]      # [HP, HP] node_mlp_1 L1 (edge part), transposed
        w1b_T = wm_ref[1 * HP:2 * HP, :]      # [HP, HP] node_mlp_1 L2, transposed
        wv = wv_ref[...]                      # [HP, 8]
        w1ip = wv[:, 0:1]                     # [HP, 1]  node_mlp_1 L1 (ip column)
        b1a = wv[:, 1:2]
        b1b = wv[:, 2:3]                      # row H holds 1.0 -> free per-node counts

        # node_mlp_1, feature-major: [HP, TE].
        ip_e = ip_edge_ref[...]               # [1, TE]  <x[row],x[row]>_M, precomputed
        h1 = w1ip * ip_e                      # rank-1 outer product on the VPU
        h1 += jnp.dot(w1e_T, eT_ref[...], preferred_element_type=jnp.float32)
        h1 = jnp.maximum(h1 + b1a, 0.0)
        m1 = jnp.dot(w1b_T, h1, preferred_element_type=jnp.float32) + b1b   # [HP, TE]

        # scatter-add into this node tile's accumulator.  Padded edges carry
        # col == N_pad which matches no tile -> all-zero one-hot column.
        te = col_ref.shape[0]
        col_local = col_ref[...] - i * TN                                   # [TE, 1]
        onehot = (col_local == lax.broadcasted_iota(jnp.int32, (te, TN), 1)
                  ).astype(jnp.float32)                                     # [TE, TN]
        acc_ref[...] += jnp.dot(m1, onehot, preferred_element_type=jnp.float32)

        @pl.when(k == pl.num_programs(1) - 1)
        def _finalize():
            w2e_T = wm_ref[2 * HP:3 * HP, :]
            w2b_T = wm_ref[3 * HP:4 * HP, :]
            w2ip = wv[:, 3:4]
            b2a = wv[:, 4:5]
            b2b = wv[:, 5:6]

            acc = acc_ref[...]                       # [HP, TN]  rows 0..H-1 sums, row H counts
            count = acc[H:H + 1, :]                  # f32 counts are exact up to 2^24 edges
            mean = acc / jnp.maximum(count, 1.0)     # exact division (no approx reciprocal);
                                                     # rows >= H are zeroed by w2e_T padding
            ipn = ip_nodes_ref[...]                  # [1, TN]  <x,x>_M, precomputed
            h2 = w2ip * ipn
            h2 += jnp.dot(w2e_T, mean, preferred_element_type=jnp.float32)
            h2 = jnp.maximum(h2 + b2a, 0.0)
            out_ref[...] = (jnp.dot(w2b_T, h2, preferred_element_type=jnp.float32)
                            + b2b)

    return kernel


def lorentz_node_block(x, edge_index, edge_attr, params, *,
                       node_tile=None, edge_tile=None):
    """Forward pass of LorentzNodeBlock.forward(x, edge_index, edge_attr, u, batch)."""
    f32 = jnp.float32
    N = x.shape[0]
    E, H = edge_attr.shape
    HP = _round_up(H + 1, 8)                          # 14 -> 16 (room for count row)

    # --- generation-aware VMEM budget --------------------------------------
    try:
        vmem_cap = int(pltpu.get_tpu_info().vmem_capacity_bytes)
    except Exception:
        vmem_cap = 64 * 1024 * 1024                   # conservative (v7x per-core)
    vmem_limit = max(32 * 1024 * 1024,
                     min(int(vmem_cap * 0.8), 112 * 1024 * 1024))

    # --- tile selection -----------------------------------------------------
    if node_tile is None:
        TN = min(_round_up(N, 128), 512)
    else:
        TN = max(128, _round_up(node_tile, 128))
    N_pad = _round_up(N, TN)

    if edge_tile is None:
        # Binding VMEM consumers per edge tile: the [TE, TN] one-hot, the
        # double-buffered [HP, TE] input tile and the [HP, TE] intermediates.
        te = (vmem_limit * 2 // 5) // (4 * TN + 64 * HP + 512)
        te = max(512, min(te, 2048))
    else:
        te = max(128, edge_tile)
    te = max(128, (te // 128) * 128)
    te = min(te, _round_up(E, 128))
    E_pad = _round_up(E, te)

    # --- wrapper-side prep (plain XLA, done once) ---------------------------
    x = x.astype(f32)
    metric = jnp.array([-1.0, 1.0, 1.0, 1.0], f32)
    ip_nodes = jnp.sum(x * x * metric, axis=1)                        # [N]  <x,x>_M
    row = edge_index[0].astype(jnp.int32)
    col = edge_index[1].astype(jnp.int32)
    ip_edge = jnp.take(ip_nodes, row)                                 # [E]  <x[row],x[row]>_M

    ip_edge = jnp.pad(ip_edge, (0, E_pad - E)).reshape(1, E_pad)
    col = jnp.pad(col, (0, E_pad - E), constant_values=N_pad).reshape(E_pad, 1)
    ip_nodes = jnp.pad(ip_nodes, (0, N_pad - N)).reshape(1, N_pad)
    eT = jnp.pad(edge_attr.astype(f32),
                 ((0, E_pad - E), (0, HP - H))).T                     # [HP, E_pad]

    # --- weights: transposed (out-major), padded to HP, packed into 2 slabs --
    def padM(w):   # [in, out] -> [HP(out), HP(in)]
        return jnp.pad(w.astype(f32).T,
                       ((0, HP - w.shape[1]), (0, HP - w.shape[0])))

    def padV(v):   # [1, out] -> [HP, 1]
        return jnp.pad(v.astype(f32).reshape(-1, 1),
                       ((0, HP - v.shape[1]), (0, 0)))

    b1b_T = padV(params["b1b"]).at[H, 0].set(1.0)     # count-bias row -> free counts

    w_mats = jnp.concatenate(
        [padM(params["w1a_e"]), padM(params["w1b"]),
         padM(params["w2a_e"]), padM(params["w2b"])], axis=0)         # [4*HP, HP]
    w_vecs = jnp.concatenate(
        [padV(params["w1a_ip"]), padV(params["b1a"]), b1b_T,
         padV(params["w2a_ip"]), padV(params["b2a"]), padV(params["b2b"]),
         jnp.zeros((HP, 2), f32)], axis=1)                            # [HP, 8]

    n_nt = N_pad // TN
    n_et = E_pad // te

    grid_spec = pltpu.PrefetchScalarGridSpec(
        num_scalar_prefetch=0,
        grid=(n_nt, n_et),
        in_specs=[
            pl.BlockSpec((1, te), lambda i, k: (0, k)),        # ip_edge tile
            pl.BlockSpec((te, 1), lambda i, k: (k, 0)),        # col tile
            pl.BlockSpec((HP, te), lambda i, k: (0, k)),       # edge_attr^T tile
            pl.BlockSpec((1, TN), lambda i, k: (0, i)),        # ip_nodes (node tile)
            pl.BlockSpec((4 * HP, HP), lambda i, k: (0, 0)),   # matrix slab (resident)
            pl.BlockSpec((HP, 8), lambda i, k: (0, 0)),        # vector slab (resident)
        ],
        out_specs=pl.BlockSpec((HP, TN), lambda i, k: (0, i)),
        scratch_shapes=[pltpu.VMEM((HP, TN), jnp.float32)],    # [sums | count row] accumulator
    )

    flops = (n_nt * 4 * HP * HP * E_pad          # MLP1 (re-done per node tile)
             + 2 * HP * E_pad * N_pad            # one-hot scatter matmul
             + 4 * HP * HP * N_pad)              # MLP2
    bytes_accessed = (n_nt * (HP + 2) * E_pad * 4
                      + (N_pad + 4 * HP * HP + 8 * HP + HP * N_pad) * 4)

    out_T = pl.pallas_call(
        _make_kernel(H, HP, TN),
        out_shape=jax.ShapeDtypeStruct((HP, N_pad), jnp.float32),
        grid_spec=grid_spec,
        compiler_params=pltpu.CompilerParams(
            dimension_semantics=("parallel", "arbitrary"),     # node axis parallel (v7x 2 TCs),
            vmem_limit_bytes=vmem_limit,                       # edge axis carries the accumulator
        ),
        cost_estimate=pl.CostEstimate(
            flops=flops, transcendentals=0, bytes_accessed=bytes_accessed),
    )(ip_edge, col, eT, ip_nodes, w_mats, w_vecs)

    return out_T[:H, :N].T


def reference_forward(x, edge_index, edge_attr, params):
    """Pure-JAX replica of the PyTorch forward for validation."""
    mink = jnp.diag(jnp.array([-1.0, 1.0, 1.0, 1.0], jnp.float32))

    def innerprod(a, b):
        return jnp.sum((a @ mink) * b, axis=1, keepdims=True)

    row, col = edge_index[0], edge_index[1]
    out = jnp.concatenate([innerprod(x[row], x[row]), edge_attr], axis=1)
    W1 = jnp.concatenate([params["w1a_ip"], params["w1a_e"]], axis=0)   # [1+H, H]
    out = jnp.maximum(out @ W1 + params["b1a"], 0.0) @ params["w1b"] + params["b1b"]

    N = x.shape[0]
    seg_sum = jax.ops.segment_sum(out, col, num_segments=N)
    counts = jax.ops.segment_sum(jnp.ones((out.shape[0],), jnp.float32), col, num_segments=N)
    mean = seg_sum / jnp.maximum(counts, 1.0)[:, None]

    out2 = jnp.concatenate([innerprod(x, x), mean], axis=1)
    W2 = jnp.concatenate([params["w2a_ip"], params["w2a_e"]], axis=0)
    return jnp.maximum(out2 @ W2 + params["b2a"], 0.0) @ params["w2b"] + params["b2b"]


def make_params(key, hidden=HIDDEN):
    # Deterministic synthetic init (shapes match nn.Linear(1+hidden, hidden) etc.,
    # stored as [in, out] so the reference computes x @ W + b).
    ks = jax.random.split(key, 8)
    s = 0.1
    W1 = jax.random.normal(ks[0], (1 + hidden, hidden), jnp.float32) * s
    W1b = jax.random.normal(ks[1], (hidden, hidden), jnp.float32) * s
    W2 = jax.random.normal(ks[2], (1 + hidden, hidden), jnp.float32) * s
    W2b = jax.random.normal(ks[3], (hidden, hidden), jnp.float32) * s
    return {
        "w1a_ip": W1[:1, :], "w1a_e": W1[1:, :],
        "b1a": jax.random.normal(ks[4], (1, hidden), jnp.float32) * s,
        "w1b": W1b,
        "b1b": jax.random.normal(ks[5], (1, hidden), jnp.float32) * s,
        "w2a_ip": W2[:1, :], "w2a_e": W2[1:, :],
        "b2a": jax.random.normal(ks[6], (1, hidden), jnp.float32) * s,
        "w2b": W2b,
        "b2b": jax.random.normal(ks[7], (1, hidden), jnp.float32) * s,
    }


if __name__ == "__main__":
    key = jax.random.PRNGKey(0)
    k_x, k_e, k_ri, k_ci, k_p = jax.random.split(key, 5)

    # Small graph.  N=200 with node_tile=128 -> 2 node tiles (exercises the
    # "parallel" node axis, node padding and per-tile scatter offsets);
    # E=250 with edge_tile=128 -> 2 edge tiles (exercises the accumulator
    # init/finalize path and edge padding).
    N, E, H = 200, 250, HIDDEN
    x = jax.random.normal(k_x, (N, 4), jnp.float32)
    edge_attr = jax.random.normal(k_e, (E, H), jnp.float32)
    row = jax.random.randint(k_ri, (E,), 0, N, jnp.int32)
    col = jax.random.randint(k_ci, (E,), 0, N, jnp.int32)
    edge_index = jnp.stack([row, col], axis=0)   # [2, E]

    params = make_params(k_p, H)
    ref = reference_forward(x, edge_index, edge_attr, params)

    # Forced small tiles (multi-tile grid coverage).
    out = lorentz_node_block(x, edge_index, edge_attr, params,
                             node_tile=128, edge_tile=128)
    out = jax.block_until_ready(out)
    assert out.shape == (N, H) and out.dtype == jnp.float32
    max_diff = jnp.max(jnp.abs(out - ref))
    assert jnp.allclose(out, ref, rtol=1e-4, atol=1e-4), f"max abs diff {max_diff}"

    # Auto (adaptive) tile selection path.
    out_auto = lorentz_node_block(x, edge_index, edge_attr, params)
    out_auto = jax.block_until_ready(out_auto)
    max_diff_auto = jnp.max(jnp.abs(out_auto - ref))
    assert jnp.allclose(out_auto, ref, rtol=1e-4, atol=1e-4), \
        f"max abs diff (auto tiles) {max_diff_auto}"

    print("KERNEL_OK")
</pallas_src>

<mosaic_0001>
module attributes {stable_mosaic.version = 11 : i64} {
  func.func @kernel(%arg0: i32, %arg1: i32, %arg2: memref<1x128xf32, #tpu.memory_space<vmem>>, %arg3: memref<128x1xi32, #tpu.memory_space<vmem>>, %arg4: memref<16x128xf32, #tpu.memory_space<vmem>>, %arg5: memref<1x128xf32, #tpu.memory_space<vmem>>, %arg6: memref<64x16xf32, #tpu.memory_space<vmem>>, %arg7: memref<16x8xf32, #tpu.memory_space<vmem>>, %arg8: memref<16x128xf32, #tpu.memory_space<vmem>>, %arg9: memref<16x128xf32, #tpu.memory_space<vmem>>) attributes {dimension_semantics = [#tpu.dimension_semantics<parallel>, #tpu.dimension_semantics<arbitrary>], iteration_bounds = array<i64: 2, 2>, scalar_prefetch = 0 : i64, scratch_operands = 1 : i64, tpu.core_type = #tpu.core_type<tc>, window_params = [{transform_indices = @transform_0, window_bounds = array<i64: 1, 128>}, {transform_indices = @transform_1, window_bounds = array<i64: 128, 1>}, {transform_indices = @transform_2, window_bounds = array<i64: 16, 128>}, {transform_indices = @transform_3, window_bounds = array<i64: 1, 128>}, {pipeline_mode = #tpu.pipeline_mode<synchronous>, transform_indices = @transform_4, window_bounds = array<i64: 64, 16>}, {pipeline_mode = #tpu.pipeline_mode<synchronous>, transform_indices = @transform_5, window_bounds = array<i64: 16, 8>}, {transform_indices = @transform_6, window_bounds = array<i64: 16, 128>}]} {
    %c0_i32 = arith.constant 0 : i32
    %0 = arith.cmpi eq, %arg1, %c0_i32 : i32
    %1 = arith.extui %0 : i1 to i32
    %c0_i32_0 = arith.constant 0 : i32
    %2 = arith.cmpi ne, %1, %c0_i32_0 : i32
    scf.if %2 {
      %cst_19 = arith.constant 0.000000e+00 : f32
      %39 = vector.broadcast %cst_19 : f32 to vector<16x128xf32>
      %c0_20 = arith.constant 0 : index
      %c0_21 = arith.constant 0 : index
      %40 = vector.load %arg9[%c0_20, %c0_21] : memref<16x128xf32, #tpu.memory_space<vmem>>, vector<16x128xf32>
      tpu.vector_store %arg9[%c0_20, %c0_21], %39 {strides = array<i32>} : memref<16x128xf32, #tpu.memory_space<vmem>>, vector<16x128xf32>,
    } else {
    }
    %c0 = arith.constant 0 : index
    %c0_1 = arith.constant 0 : index
    %3 = vector.load %arg6[%c0, %c0_1] : memref<64x16xf32, #tpu.memory_space<vmem>>, vector<16x16xf32>
    %c16 = arith.constant 16 : index
    %c0_2 = arith.constant 0 : index
    %4 = vector.load %arg6[%c16, %c0_2] : memref<64x16xf32, #tpu.memory_space<vmem>>, vector<16x16xf32>
    %c0_3 = arith.constant 0 : index
    %c0_4 = arith.constant 0 : index
    %5 = vector.load %arg7[%c0_3, %c0_4] : memref<16x8xf32, #tpu.memory_space<vmem>>, vector<16x8xf32>
    %6 = vector.extract_strided_slice %5 {offsets = [0, 0], sizes = [16, 1], strides = [1, 1]} : vector<16x8xf32> to vector<16x1xf32>
    %7 = vector.extract_strided_slice %5 {offsets = [0, 1], sizes = [16, 1], strides = [1, 1]} : vector<16x8xf32> to vector<16x1xf32>
    %8 = vector.extract_strided_slice %5 {offsets = [0, 2], sizes = [16, 1], strides = [1, 1]} : vector<16x8xf32> to vector<16x1xf32>
    %c0_5 = arith.constant 0 : index
    %c0_6 = arith.constant 0 : index
    %9 = vector.load %arg2[%c0_5, %c0_6] : memref<1x128xf32, #tpu.memory_space<vmem>>, vector<1x128xf32>
    %10 = vector.broadcast %6 : vector<16x1xf32> to vector<16x128xf32>
    %11 = vector.broadcast %9 : vector<1x128xf32> to vector<16x128xf32>
    %12 = arith.mulf %10, %11 : vector<16x128xf32>
    %c0_7 = arith.constant 0 : index
    %c0_8 = arith.constant 0 : index
    %13 = vector.load %arg4[%c0_7, %c0_8] : memref<16x128xf32, #tpu.memory_space<vmem>>, vector<16x128xf32>
    %cst = arith.constant dense<0.000000e+00> : vector<16x128xf32>
    %14 = tpu.matmul %3, %13, %cst {dimension_numbers = #tpu.dot_dimension_numbers<[1], [0], [0], [1], [0, 0, 1, 1], [], []>} : vector<16x16xf32>, vector<16x128xf32>, vector<16x128xf32> -> vector<16x128xf32>
    %15 = arith.addf %12, %14 : vector<16x128xf32>
    %16 = vector.broadcast %7 : vector<16x1xf32> to vector<16x128xf32>
    %17 = arith.addf %15, %16 : vector<16x128xf32>
    %cst_9 = arith.constant 0.000000e+00 : f32
    %18 = vector.broadcast %cst_9 : f32 to vector<16x128xf32>
    %19 = arith.maximumf %17, %18 : vector<16x128xf32>
    %cst_10 = arith.constant dense<0.000000e+00> : vector<16x128xf32>
    %20 = tpu.matmul %4, %19, %cst_10 {dimension_numbers = #tpu.dot_dimension_numbers<[1], [0], [0], [1], [0, 0, 1, 1], [], []>} : vector<16x16xf32>, vector<16x128xf32>, vector<16x128xf32> -> vector<16x128xf32>
    %21 = vector.broadcast %8 : vector<16x1xf32> to vector<16x128xf32>
    %22 = arith.addf %20, %21 : vector<16x128xf32>
    %c0_11 = arith.constant 0 : index
    %c0_12 = arith.constant 0 : index
    %23 = vector.load %arg3[%c0_11, %c0_12] : memref<128x1xi32, #tpu.memory_space<vmem>>, vector<128x1xi32>
    %c128_i32 = arith.constant 128 : i32
    %24 = arith.muli %arg0, %c128_i32 : i32
    %25 = vector.broadcast %24 : i32 to vector<128x1xi32>
    %26 = arith.subi %23, %25 : vector<128x1xi32>
    %27 = tpu.iota {dimensions = array<i32: 1>} : vector<128x128xi32>
    %28 = vector.broadcast %26 : vector<128x1xi32> to vector<128x128xi32>
    %29 = arith.cmpi eq, %28, %27 : vector<128x128xi32>
    %30 = arith.extui %29 : vector<128x128xi1> to vector<128x128xi32>
    %31 = arith.sitofp %30 : vector<128x128xi32> to vector<128x128xf32>
    %c0_13 = arith.constant 0 : index
    %c0_14 = arith.constant 0 : index
    %32 = vector.load %arg9[%c0_13, %c0_14] : memref<16x128xf32, #tpu.memory_space<vmem>>, vector<16x128xf32>
    %cst_15 = arith.constant dense<0.000000e+00> : vector<16x128xf32>
    %33 = tpu.matmul %22, %31, %cst_15 {dimension_numbers = #tpu.dot_dimension_numbers<[1], [0], [0], [1], [0, 0, 1, 1], [], []>} : vector<16x128xf32>, vector<128x128xf32>, vector<16x128xf32> -> vector<16x128xf32>
    %34 = arith.addf %32, %33 : vector<16x128xf32>
    %c0_16 = arith.constant 0 : index
    %c0_17 = arith.constant 0 : index
    %35 = vector.load %arg9[%c0_16, %c0_17] : memref<16x128xf32, #tpu.memory_space<vmem>>, vector<16x128xf32>
    tpu.vector_store %arg9[%c0_16, %c0_17], %34 {strides = array<i32>} : memref<16x128xf32, #tpu.memory_space<vmem>>, vector<16x128xf32>,
    %c1_i32 = arith.constant 1 : i32
    %36 = arith.cmpi eq, %arg1, %c1_i32 : i32
    %37 = arith.extui %36 : i1 to i32
    %c0_i32_18 = arith.constant 0 : i32
    %38 = arith.cmpi ne, %37, %c0_i32_18 : i32
    scf.if %38 {
      %c32 = arith.constant 32 : index
      %c0_19 = arith.constant 0 : index
      %39 = vector.load %arg6[%c32, %c0_19] : memref<64x16xf32, #tpu.memory_space<vmem>>, vector<16x16xf32>
      %c48 = arith.constant 48 : index
      %c0_20 = arith.constant 0 : index
      %40 = vector.load %arg6[%c48, %c0_20] : memref<64x16xf32, #tpu.memory_space<vmem>>, vector<16x16xf32>
      %41 = vector.extract_strided_slice %5 {offsets = [0, 3], sizes = [16, 1], strides = [1, 1]} : vector<16x8xf32> to vector<16x1xf32>
      %42 = vector.extract_strided_slice %5 {offsets = [0, 4], sizes = [16, 1], strides = [1, 1]} : vector<16x8xf32> to vector<16x1xf32>
      %43 = vector.extract_strided_slice %5 {offsets = [0, 5], sizes = [16, 1], strides = [1, 1]} : vector<16x8xf32> to vector<16x1xf32>
      %c0_21 = arith.constant 0 : index
      %c0_22 = arith.constant 0 : index
      %44 = vector.load %arg9[%c0_21, %c0_22] : memref<16x128xf32, #tpu.memory_space<vmem>>, vector<16x128xf32>
      %45 = vector.extract_strided_slice %44 {offsets = [14, 0], sizes = [1, 128], strides = [1, 1]} : vector<16x128xf32> to vector<1x128xf32>
      %cst_23 = arith.constant 1.000000e+00 : f32
      %46 = vector.broadcast %cst_23 : f32 to vector<1x128xf32>
      %47 = arith.maximumf %45, %46 : vector<1x128xf32>
      %48 = vector.broadcast %47 : vector<1x128xf32> to vector<16x128xf32>
      %49 = arith.divf %44, %48 : vector<16x128xf32>
      %c0_24 = arith.constant 0 : index
      %c0_25 = arith.constant 0 : index
      %50 = vector.load %arg5[%c0_24, %c0_25] : memref<1x128xf32, #tpu.memory_space<vmem>>, vector<1x128xf32>
      %51 = vector.broadcast %41 : vector<16x1xf32> to vector<16x128xf32>
      %52 = vector.broadcast %50 : vector<1x128xf32> to vector<16x128xf32>
      %53 = arith.mulf %51, %52 : vector<16x128xf32>
      %cst_26 = arith.constant dense<0.000000e+00> : vector<16x128xf32>
      %54 = tpu.matmul %39, %49, %cst_26 {dimension_numbers = #tpu.dot_dimension_numbers<[1], [0], [0], [1], [0, 0, 1, 1], [], []>} : vector<16x16xf32>, vector<16x128xf32>, vector<16x128xf32> -> vector<16x128xf32>
      %55 = arith.addf %53, %54 : vector<16x128xf32>
      %56 = vector.broadcast %42 : vector<16x1xf32> to vector<16x128xf32>
      %57 = arith.addf %55, %56 : vector<16x128xf32>
      %cst_27 = arith.constant 0.000000e+00 : f32
      %58 = vector.broadcast %cst_27 : f32 to vector<16x128xf32>
      %59 = arith.maximumf %57, %58 : vector<16x128xf32>
      %cst_28 = arith.constant dense<0.000000e+00> : vector<16x128xf32>
      %60 = tpu.matmul %40, %59, %cst_28 {dimension_numbers = #tpu.dot_dimension_numbers<[1], [0], [0], [1], [0, 0, 1, 1], [], []>} : vector<16x16xf32>, vector<16x128xf32>, vector<16x128xf32> -> vector<16x128xf32>
      %61 = vector.broadcast %43 : vector<16x1xf32> to vector<16x128xf32>
      %62 = arith.addf %60, %61 : vector<16x128xf32>
      %c0_29 = arith.constant 0 : index
      %c0_30 = arith.constant 0 : index
      %63 = vector.load %arg8[%c0_29, %c0_30] : memref<16x128xf32, #tpu.memory_space<vmem>>, vector<16x128xf32>
      tpu.vector_store %arg8[%c0_29, %c0_30], %62 {strides = array<i32>} : memref<16x128xf32, #tpu.memory_space<vmem>>, vector<16x128xf32>,
    } else {
    }
    return
  }
  func.func @transform_0(%arg0: i32, %arg1: i32) -> (i32, i32) {
    %c0_i32 = arith.constant 0 : i32
    %c0_i32_0 = arith.constant 0 : i32
    return %c0_i32, %arg1 : i32, i32
  }
  func.func @transform_1(%arg0: i32, %arg1: i32) -> (i32, i32) {
    %c0_i32 = arith.constant 0 : i32
    %c0_i32_0 = arith.constant 0 : i32
    return %arg1, %c0_i32 : i32, i32
  }
  func.func @transform_2(%arg0: i32, %arg1: i32) -> (i32, i32) {
    %c0_i32 = arith.constant 0 : i32
    %c0_i32_0 = arith.constant 0 : i32
    return %c0_i32, %arg1 : i32, i32
  }
  func.func @transform_3(%arg0: i32, %arg1: i32) -> (i32, i32) {
    %c0_i32 = arith.constant 0 : i32
    %c0_i32_0 = arith.constant 0 : i32
    return %c0_i32, %arg0 : i32, i32
  }
  func.func @transform_4(%arg0: i32, %arg1: i32) -> (i32, i32) {
    %c0_i32 = arith.constant 0 : i32
    %c0_i32_0 = arith.constant 0 : i32
    %c0_i32_1 = arith.constant 0 : i32
    return %c0_i32, %c0_i32_0 : i32, i32
  }
  func.func @transform_5(%arg0: i32, %arg1: i32) -> (i32, i32) {
    %c0_i32 = arith.constant 0 : i32
    %c0_i32_0 = arith.constant 0 : i32
    %c0_i32_1 = arith.constant 0 : i32
    return %c0_i32, %c0_i32_0 : i32, i32
  }
  func.func @transform_6(%arg0: i32, %arg1: i32) -> (i32, i32) {
    %c0_i32 = arith.constant 0 : i32
    %c0_i32_0 = arith.constant 0 : i32
    return %c0_i32, %arg0 : i32, i32
  }
}

</mosaic_0001>

<llo_original>
// kernel: tpu_custom_call.1
$region0: #{tpu_custom_call.1}
  #allocation0 [shape = 'u32[]', space=smem, size = 0x4, offset = 0x4, fixed_abs, tag = 'smem constant byte address 0x4 - core index']
  #allocation1 [shape = 'u32[144,128]{1,0:T(1,128)}', space=vmem, size = 0x12000, scoped, tag = 'internal scratch']
  #allocation2 [shape = 'f32[16,128]{1,0:T(8,128)}', space=vmem, size = 0x2000, scoped, tag = 'scratch operand']
  %s0 = inlined_call_operand.vmem [shape: f32[1,256], index: 0, kind: input, shape index: {}]
  %s1 = inlined_call_operand.vmem [shape: s32[256,1], index: 1, kind: input, shape index: {}]
  %s2 = inlined_call_operand.vmem [shape: f32[16,256], index: 2, kind: input, shape index: {}]
  %s3 = inlined_call_operand.vmem [shape: f32[1,256], index: 3, kind: input, shape index: {}]
  %s4 = inlined_call_operand.vmem [shape: f32[64,16], index: 4, kind: input, shape index: {}]
  %s5 = inlined_call_operand.vmem [shape: f32[16,8], index: 5, kind: input, shape index: {}]
  %s6 = inlined_call_operand.hbm [shape: f32[16,256], index: 6, kind: output, shape index: {}]
  %s7 = sld [smem:[#allocation0]]
  $region103: #{tpu_custom_call.1} parent=0
    _
  %s9 = ssub.s32 1, %s7
  %s10 = scalar_select 0, %s9, %s7
  $region1: #{tpu_custom_call.1} parent=0
    #allocation3 [shape = 'u8[16384]{0}', space=vmem, size = 0x4000, scoped, tag = 'input window, operand 2']
    #allocation4 [shape = 'u8[16384]{0}', space=vmem, size = 0x4000, scoped, tag = 'output window, operand 0']
    #allocation5 [shape = 's32[2]{0}', space=sflag, size = 0x8, scoped, tag = 'scoped memory for tpu_custom_call.1']
    %11 = vsyncpa [#allocation5], 0
    %s12 = scalar_lea.sflag [#allocation5], 1
    %13 = vsyncpa %s12, 0
    loop: start=0, step=1, limit=6
    $region2: #{tpu_custom_call.1} parent=1 // loop_pre_header
      _
    $region3: #{tpu_custom_call.1} parent=1 // loop_header
      %s15 = sphi 0, %s19
      %p16 = scmp.ge.s32.totalorder %s15, 6
      %s22 = sphi 0, %s34
      %s23 = sphi 0, %s30
      %s24 = sphi 0, %s22
      %s25 = sphi 0, %s23
      %s26 = sphi 0, %s24
      %s27 = sphi 0, %s25
      %s37 = sphi 0, %s39
      %s40 = sphi 0, %s37
      %s41 = sphi 0, %s40
      %s57 = sphi 0, %s41
      %s63 = sphi 0, %s65
      %s66 = sphi 0, %s63
      %s67 = sphi 0, %s66
      %s83 = sphi 0, %s67
      %s89 = sphi 0, %s91
      %s92 = sphi 0, %s89
      %s93 = sphi 0, %s92
      %s109 = sphi 0, %s93
      %s115 = sphi 0, %s117
      %s118 = sphi 0, %s115
      %s119 = sphi 0, %s118
      %s135 = sphi 0, %s119
      %s139 = sphi 0, %s139
      %s141 = sphi 0, %s139
      %s142 = sphi 0, %s141
      %s156 = sphi 0, %s142
      %s160 = sphi 0, %s160
      %s162 = sphi 0, %s160
      %s163 = sphi 0, %s162
      %s177 = sphi 0, %s163
      %s183 = sphi 0, %s185
      %s186 = sphi 0, %s183
      %s187 = sphi 0, %s186
      %s203 = sphi 0, %s187
    $region4: #{tpu_custom_call.1} parent=1 // loop_header_branch
      %18 = sbr.rel (%p16) target = $region8
    $region5: #{tpu_custom_call.1} parent=1 // loop_body
      %s20 = ssub.s32 %s15, 1
      %s21 = ssub.s32 %s15, 2
      %s28 = sadd.s32 1, %s23
      %p29 = scmp.ge.s32.totalorder %s28, 2
      %s30 = scalar_select %p29, 0, %s28
      %s31 = sadd.s32 1, %s22
      %s32 = scalar_select %p29, %s31, %s22
      %p33 = scmp.ge.s32.totalorder %s32, 2
      %s34 = scalar_select %p33, 0, %s32
      %s35 = ssub.s32 %s23, %s30
      %p36 = scmp.eq.s32.totalorder %s35, 0
      %s38 = sadd.s32 %s37, 1
      %s39 = scalar_select %p36, %s37, %s38
      %p42 = pneg %p36
      %p43 = scmp.eq.s32.totalorder %s15, 3
      %p44 = por %p42, %p43
      %p45 = scmp.ne.s32.totalorder %s37, %s40
      %p46 = scmp.eq.s32.totalorder %s15, 0
      %p47 = por %p45, %p46
      %p48 = scmp.ne.s32.totalorder %s37, %s40
      %p49 = scmp.eq.s32.totalorder %s20, 3
      %p50 = por %p48, %p49
      %p51 = scmp.ne.s32.totalorder %s40, %s41
      %p52 = scmp.eq.s32.totalorder %s20, 0
      %p53 = por %p51, %p52
      %p54 = scmp.ne.s32.totalorder %s40, %s41
      %p55 = scmp.eq.s32.totalorder %s21, 3
      %p56 = por %p54, %p55
      %p58 = scmp.ne.s32.totalorder %s41, %s57
      %p59 = scmp.eq.s32.totalorder %s21, 0
      %p60 = por %p58, %p59
      %s61 = ssub.s32 %s23, %s30
      %p62 = scmp.eq.s32.totalorder %s61, 0
      %s64 = sadd.s32 %s63, 1
      %s65 = scalar_select %p62, %s63, %s64
      %p68 = pneg %p62
      %p69 = scmp.eq.s32.totalorder %s15, 3
      %p70 = por %p68, %p69
      %p71 = scmp.ne.s32.totalorder %s63, %s66
      %p72 = scmp.eq.s32.totalorder %s15, 0
      %p73 = por %p71, %p72
      %p74 = scmp.ne.s32.totalorder %s63, %s66
      %p75 = scmp.eq.s32.totalorder %s20, 3
      %p76 = por %p74, %p75
      %p77 = scmp.ne.s32.totalorder %s66, %s67
      %p78 = scmp.eq.s32.totalorder %s20, 0
      %p79 = por %p77, %p78
      %p80 = scmp.ne.s32.totalorder %s66, %s67
      %p81 = scmp.eq.s32.totalorder %s21, 3
      %p82 = por %p80, %p81
      %p84 = scmp.ne.s32.totalorder %s67, %s83
      %p85 = scmp.eq.s32.totalorder %s21, 0
      %p86 = por %p84, %p85
      %s87 = ssub.s32 %s23, %s30
      %p88 = scmp.eq.s32.totalorder %s87, 0
      %s90 = sadd.s32 %s89, 1
      %s91 = scalar_select %p88, %s89, %s90
      %p94 = pneg %p88
      %p95 = scmp.eq.s32.totalorder %s15, 3
      %p96 = por %p94, %p95
      %p97 = scmp.ne.s32.totalorder %s89, %s92
      %p98 = scmp.eq.s32.totalorder %s15, 0
      %p99 = por %p97, %p98
      %p100 = scmp.ne.s32.totalorder %s89, %s92
      %p101 = scmp.eq.s32.totalorder %s20, 3
      %p102 = por %p100, %p101
      %p103 = scmp.ne.s32.totalorder %s92, %s93
      %p104 = scmp.eq.s32.totalorder %s20, 0
      %p105 = por %p103, %p104
      %p106 = scmp.ne.s32.totalorder %s92, %s93
      %p107 = scmp.eq.s32.totalorder %s21, 3
      %p108 = por %p106, %p107
      %p110 = scmp.ne.s32.totalorder %s93, %s109
      %p111 = scmp.eq.s32.totalorder %s21, 0
      %p112 = por %p110, %p111
      %s113 = ssub.s32 %s22, %s34
      %p114 = scmp.eq.s32.totalorder %s113, 0
      %s116 = sadd.s32 %s115, 1
      %s117 = scalar_select %p114, %s115, %s116
      %p120 = pneg %p114
      %p121 = scmp.eq.s32.totalorder %s15, 3
      %p122 = por %p120, %p121
      %p123 = scmp.ne.s32.totalorder %s115, %s118
      %p124 = scmp.eq.s32.totalorder %s15, 0
      %p125 = por %p123, %p124
      %p126 = scmp.ne.s32.totalorder %s115, %s118
      %p127 = scmp.eq.s32.totalorder %s20, 3
      %p128 = por %p126, %p127
      %p129 = scmp.ne.s32.totalorder %s118, %s119
      %p130 = scmp.eq.s32.totalorder %s20, 0
      %p131 = por %p129, %p130
      %p132 = scmp.ne.s32.totalorder %s118, %s119
      %p133 = scmp.eq.s32.totalorder %s21, 3
      %p134 = por %p132, %p133
      %p136 = scmp.ne.s32.totalorder %s119, %s135
      %p137 = scmp.eq.s32.totalorder %s21, 0
      %p138 = por %p136, %p137
      %s140 = sadd.s32 %s139, 1
      %p143 = scmp.eq.s32.totalorder %s15, 3
      %p144 = scmp.ne.s32.totalorder %s139, %s141
      %p145 = scmp.eq.s32.totalorder %s15, 0
      %p146 = por %p144, %p145
      %p147 = scmp.ne.s32.totalorder %s139, %s141
      %p148 = scmp.eq.s32.totalorder %s20, 3
      %p149 = por %p147, %p148
      %p150 = scmp.ne.s32.totalorder %s141, %s142
      %p151 = scmp.eq.s32.totalorder %s20, 0
      %p152 = por %p150, %p151
      %p153 = scmp.ne.s32.totalorder %s141, %s142
      %p154 = scmp.eq.s32.totalorder %s21, 3
      %p155 = por %p153, %p154
      %p157 = scmp.ne.s32.totalorder %s142, %s156
      %p158 = scmp.eq.s32.totalorder %s21, 0
      %p159 = por %p157, %p158
      %s161 = sadd.s32 %s160, 1
      %p164 = scmp.eq.s32.totalorder %s15, 3
      %p165 = scmp.ne.s32.totalorder %s160, %s162
      %p166 = scmp.eq.s32.totalorder %s15, 0
      %p167 = por %p165, %p166
      %p168 = scmp.ne.s32.totalorder %s160, %s162
      %p169 = scmp.eq.s32.totalorder %s20, 3
      %p170 = por %p168, %p169
      %p171 = scmp.ne.s32.totalorder %s162, %s163
      %p172 = scmp.eq.s32.totalorder %s20, 0
      %p173 = por %p171, %p172
      %p174 = scmp.ne.s32.totalorder %s162, %s163
      %p175 = scmp.eq.s32.totalorder %s21, 3
      %p176 = por %p174, %p175
      %p178 = scmp.ne.s32.totalorder %s163, %s177
      %p179 = scmp.eq.s32.totalorder %s21, 0
      %p180 = por %p178, %p179
      %s181 = ssub.s32 %s22, %s34
      %p182 = scmp.eq.s32.totalorder %s181, 0
      %s184 = sadd.s32 %s183, 1
      %s185 = scalar_select %p182, %s183, %s184
      %p188 = pneg %p182
      %p189 = scmp.eq.s32.totalorder %s15, 3
      %p190 = por %p188, %p189
      %p191 = scmp.ne.s32.totalorder %s183, %s186
      %p192 = scmp.eq.s32.totalorder %s15, 0
      %p193 = por %p191, %p192
      %p194 = scmp.ne.s32.totalorder %s183, %s186
      %p195 = scmp.eq.s32.totalorder %s20, 3
      %p196 = por %p194, %p195
      %p197 = scmp.ne.s32.totalorder %s186, %s187
      %p198 = scmp.eq.s32.totalorder %s20, 0
      %p199 = por %p197, %p198
      %p200 = scmp.ne.s32.totalorder %s186, %s187
      %p201 = scmp.eq.s32.totalorder %s21, 3
      %p202 = por %p200, %p201
      %p204 = scmp.ne.s32.totalorder %s187, %s203
      %p205 = scmp.eq.s32.totalorder %s21, 0
      %p206 = por %p204, %p205
      %p207 = scmp.le.s32.totalorder 1, %s15
      %p208 = scmp.lt.s32.totalorder %s15, 5
      %p209 = pnand %p207, %p208
      %p210 = pneg %p209
      // Predicated region
      $region9: #{tpu_custom_call.1} parent=5 // pred_check
        _
      $region10: #{tpu_custom_call.1} parent=5 // pred_check_branch
        %212 = sbr.rel (%p209) target = $region12
      $region11: #{tpu_custom_call.1} parent=5 // pred_region
        %s213 = ssub.s32 %s15, 1
        // Predicated region
        $region13: #{tpu_custom_call.1} parent=11 // pred_check
          %p214 = pneg %p152
        $region14: #{tpu_custom_call.1} parent=11 // pred_check_branch
          %216 = sbr.rel (%p214) target = $region16
        $region15: #{tpu_custom_call.1} parent=11 // pred_region
          _
        $region16: #{tpu_custom_call.1} parent=11 // pred_fallthru
          _
        // Predicated region
        $region17: #{tpu_custom_call.1} parent=11 // pred_check
          %p217 = pneg %p173
        $region18: #{tpu_custom_call.1} parent=11 // pred_check_branch
          %219 = sbr.rel (%p217) target = $region20
        $region19: #{tpu_custom_call.1} parent=11 // pred_region
          _
        $region20: #{tpu_custom_call.1} parent=11 // pred_fallthru
          _
      $region12: #{tpu_custom_call.1} parent=5 // pred_fallthru
        _
      %p220 = scmp.lt.s32.totalorder %s15, 4
      // Predicated region
      $region21: #{tpu_custom_call.1} parent=5 // pred_check
        %p221 = pneg %p220
      $region22: #{tpu_custom_call.1} parent=5 // pred_check_branch
        %223 = sbr.rel (%p221) target = $region24
      $region23: #{tpu_custom_call.1} parent=5 // pred_region
        // Predicated region
        $region25: #{tpu_custom_call.1} parent=23 // pred_check
          %p224 = pneg %p47
        $region26: #{tpu_custom_call.1} parent=23 // pred_check_branch
          %226 = sbr.rel (%p224) target = $region28
        $region27: #{tpu_custom_call.1} parent=23 // pred_region
          %p227 = scmp.lt.s32.totalorder %s23, 1
          %s228 = scalar_select %p227, %s23, 1
          %s229 = scalar_lea.vmem %s0, %s228
        $region28: #{tpu_custom_call.1} parent=23 // pred_fallthru
          _
        // Predicated region
        $region29: #{tpu_custom_call.1} parent=23 // pred_check
          %p230 = pneg %p73
        $region30: #{tpu_custom_call.1} parent=23 // pred_check_branch
          %232 = sbr.rel (%p230) target = $region32
        $region31: #{tpu_custom_call.1} parent=23 // pred_region
          %s233 = smul.u32 16, %s23
          %p234 = scmp.lt.s32.totalorder %s233, 31
          %s235 = scalar_select %p234, %s233, 31
          %s236 = smul.addr %s235, 8
          %s237 = scalar_lea.vmem %s1, %s236
          %s238 = smul.u32 16, %s23
        $region32: #{tpu_custom_call.1} parent=23 // pred_fallthru
          _
        // Predicated region
        $region33: #{tpu_custom_call.1} parent=23 // pred_check
          %p239 = pneg %p99
        $region34: #{tpu_custom_call.1} parent=23 // pred_check_branch
          %241 = sbr.rel (%p239) target = $region36
        $region35: #{tpu_custom_call.1} parent=23 // pred_region
          %s242 = sand.u32 %s89, 1
          %s243 = sand.u32 %s89, 1
          %s244 = smul.addr %s243, 16
          %s245 = scalar_lea.vmem [#allocation3], %s244
          %s246 = smul.addr %s23, 8
          %s247 = scalar_lea.vmem %s2, %s246
          // Predicated region
          $region37: #{tpu_custom_call.1} parent=35 // pred_check
            _
          $region38: #{tpu_custom_call.1} parent=35 // pred_check_branch
            %249 = sbr.rel (0) target = $region40
          $region39: #{tpu_custom_call.1} parent=35 // pred_region
            // Predicated region
            $region41: #{tpu_custom_call.1} parent=39 // pred_check
              _
            $region42: #{tpu_custom_call.1} parent=39 // pred_check_branch
              %251 = sbr.rel (0) target = $region44
            $region43: #{tpu_custom_call.1} parent=39 // pred_region
              // Predicated region
              $region56: #{tpu_custom_call.1} parent=43 // pred_check
                _
              $region57: #{tpu_custom_call.1} parent=43 // pred_check_branch
                %269 = sbr.rel (0) target = $region59
              $region58: #{tpu_custom_call.1} parent=43 // pred_region
                loop: start=0, step=1, limit=1
                $region60: #{tpu_custom_call.1} parent=58 // loop_pre_header
                  _
                $region61: #{tpu_custom_call.1} parent=58 // loop_header
                  %s271 = sphi 0, %s275
                  %p272 = scmp.ge.s32.totalorder %s271, 1
                  %s276 = sphi %s247, %s247
                  %s277 = sphi %s245, %s245
                $region62: #{tpu_custom_call.1} parent=58 // loop_header_branch
                  %274 = sbr.rel (%p272) target = $region66
                $region63: #{tpu_custom_call.1} parent=58 // loop_body
                  %v278 = vld [vmem:[%s276] sm:$0xff]
                  %279 = vst [vmem:[%s277] sm:$0xff] %v278
                  %v280 = vld [vmem:[%s276 + $0x10] sm:$0xff]
                  %281 = vst [vmem:[%s277 + $0x8] sm:$0xff] %v280
                $region64: #{tpu_custom_call.1} parent=58 // loop_footer
                  %s275 = sadd.s32 1, %s271
                $region65: #{tpu_custom_call.1} parent=58 // loop_footer_branch
                  %270 = sbr.rel target = $region61
                $region66: #{tpu_custom_call.1} parent=58 // loop_exit
                  _
              $region59: #{tpu_custom_call.1} parent=43 // pred_fallthru
                _
              // Predicated region
              $region67: #{tpu_custom_call.1} parent=43 // pred_check
                _
              $region68: #{tpu_custom_call.1} parent=43 // pred_check_branch
                %283 = sbr.rel target = $region70
              $region69: #{tpu_custom_call.1} parent=43 // pred_region
                _
              $region70: #{tpu_custom_call.1} parent=43 // pred_fallthru
                _
            $region44: #{tpu_custom_call.1} parent=39 // pred_fallthru
              _
            // Predicated region
            $region45: #{tpu_custom_call.1} parent=39 // pred_check
              _
            $region46: #{tpu_custom_call.1} parent=39 // pred_check_branch
              %253 = sbr.rel target = $region48
            $region47: #{tpu_custom_call.1} parent=39 // pred_region
              %s255 = ssub.s32 256, 1
              loop: start=0, step=1, limit=1
              $region49: #{tpu_custom_call.1} parent=47 // loop_pre_header
                _
              $region50: #{tpu_custom_call.1} parent=47 // loop_header
                %s257 = sphi 0, %s261
                %p258 = scmp.ge.s32.totalorder %s257, 1
                %s262 = sphi %s247, %s247
                %s263 = sphi %s245, %s245
              $region51: #{tpu_custom_call.1} parent=47 // loop_header_branch
                %260 = sbr.rel (%p258) target = $region55
              $region52: #{tpu_custom_call.1} parent=47 // loop_body
                %v264 = vld [vmem:[%s262] sm:%s255]
                %265 = vst [vmem:[%s263] sm:%s255] %v264
                %v266 = vld [vmem:[%s262 + $0x10] sm:%s255]
                %267 = vst [vmem:[%s263 + $0x8] sm:%s255] %v266
              $region53: #{tpu_custom_call.1} parent=47 // loop_footer
                %s261 = sadd.s32 1, %s257
              $region54: #{tpu_custom_call.1} parent=47 // loop_footer_branch
                %256 = sbr.rel target = $region50
              $region55: #{tpu_custom_call.1} parent=47 // loop_exit
                _
            $region48: #{tpu_custom_call.1} parent=39 // pred_fallthru
              _
          $region40: #{tpu_custom_call.1} parent=35 // pred_fallthru
            _
          %284 = vnop
        $region36: #{tpu_custom_call.1} parent=23 // pred_fallthru
          _
        // Predicated region
        $region71: #{tpu_custom_call.1} parent=23 // pred_check
          %p285 = pneg %p125
        $region72: #{tpu_custom_call.1} parent=23 // pred_check_branch
          %287 = sbr.rel (%p285) target = $region74
        $region73: #{tpu_custom_call.1} parent=23 // pred_region
          %p288 = scmp.lt.s32.totalorder %s22, 1
          %s289 = scalar_select %p288, %s22, 1
          %s290 = scalar_lea.vmem %s3, %s289
        $region74: #{tpu_custom_call.1} parent=23 // pred_fallthru
          _
      $region24: #{tpu_custom_call.1} parent=5 // pred_fallthru
        _
      %p291 = scmp.le.s32.totalorder 1, %s15
      %p292 = scmp.lt.s32.totalorder %s15, 5
      %p293 = pnand %p291, %p292
      %p294 = pneg %p293
      // Predicated region
      $region75: #{tpu_custom_call.1} parent=5 // pred_check
        _
      $region76: #{tpu_custom_call.1} parent=5 // pred_check_branch
        %296 = sbr.rel (%p293) target = $region78
      $region77: #{tpu_custom_call.1} parent=5 // pred_region
        %s297 = ssub.s32 %s15, 1
        %s298 = sand.u32 %s92, 1
        %s299 = sand.u32 %s92, 1
        %s300 = smul.addr %s299, 16
        %s301 = scalar_lea.vmem [#allocation3], %s300
        // Predicated region
        $region79: #{tpu_custom_call.1} parent=77 // pred_check
          %p302 = pneg %p105
        $region80: #{tpu_custom_call.1} parent=77 // pred_check_branch
          %304 = sbr.rel (%p302) target = $region82
        $region81: #{tpu_custom_call.1} parent=77 // pred_region
          _
        $region82: #{tpu_custom_call.1} parent=77 // pred_fallthru
          _
        %p305 = scmp.lt.s32.totalorder %s25, 1
        %s306 = scalar_select %p305, %s25, 1
        %s307 = scalar_lea.vmem %s0, %s306
        %p308 = pneg %p53
        %p309 = pneg %p50
        %s310 = smul.u32 16, %s25
        %p311 = scmp.lt.s32.totalorder %s310, 31
        %s312 = scalar_select %p311, %s310, 31
        %s313 = smul.addr %s312, 8
        %s314 = scalar_lea.vmem %s1, %s313
        %p315 = pneg %p79
        %p316 = pneg %p76
        %s317 = sand.u32 %s92, 1
        %s318 = sand.u32 %s92, 1
        %s319 = smul.addr %s318, 16
        %s320 = scalar_lea.vmem [#allocation3], %s319
        %p321 = pneg %p105
        %p322 = pneg %p102
        %p323 = scmp.lt.s32.totalorder %s24, 1
        %s324 = scalar_select %p323, %s24, 1
        %s325 = scalar_lea.vmem %s3, %s324
        %p326 = pneg %p131
        %p327 = pneg %p128
        %p328 = pneg %p152
        %p329 = pneg %p149
        %p330 = pneg %p173
        %p331 = pneg %p170
        %p332 = pneg %p199
        %p333 = pneg %p196
        %s334 = sand.u32 %s186, 1
        %s335 = scalar_lea.sflag [#allocation5], %s334
        %s336 = sand.u32 %s186, 1
        %s337 = smul.addr %s336, 16
        %s338 = scalar_lea.vmem [#allocation4], %s337
        %p339 = scmp.lt.s32.totalorder %s25, 1
        %s340 = scalar_select %p339, %s25, 1
        %s341 = scalar_lea.vmem %s0, %s340
        %s342 = smul.u32 16, %s25
        %p343 = scmp.lt.s32.totalorder %s342, 31
        %s344 = scalar_select %p343, %s342, 31
        %s345 = smul.addr %s344, 8
        %s346 = scalar_lea.vmem %s1, %s345
        %s347 = smul.u32 16, %s25
        %p348 = scmp.lt.s32.totalorder %s24, 1
        %s349 = scalar_select %p348, %s24, 1
        %s350 = scalar_lea.vmem %s3, %s349
        %p351 = scmp.eq.s32.totalorder %s25, 0
        // Predicated region
        $region83: #{tpu_custom_call.1} parent=77 // pred_check
          %p352 = pneg %p351
        $region84: #{tpu_custom_call.1} parent=77 // pred_check_branch
          %354 = sbr.rel (%p352) target = $region86
        $region85: #{tpu_custom_call.1} parent=77 // pred_region
          %355 = vst [vmem:[#allocation2] sm:$0xff] 0.0
          %356 = vst [vmem:[#allocation2 + $0x8] sm:$0xff] 0.0
        $region86: #{tpu_custom_call.1} parent=77 // pred_fallthru
          _
        %v357 = vld [vmem:[%s4] sm:$0xff]
        %v358 = vld [vmem:[%s4 + $0x8] sm:$0xff]
        %v359 = vld [vmem:[%s4 + $0x10] sm:$0xff]
        %v360 = vld [vmem:[%s4 + $0x18] sm:$0xff]
        %v361 = vld [vmem:[%s5] sm:$0xff]
        %v362 = vld [vmem:[%s5 + $0x8] sm:$0xff]
        %v363 = vld [vmem:[%s341] sm:$0x1]
        %365 = vset.pattern.permute.xlu0 0
        %366 = vperm.xlu0 %365, %v361
        %v367 = vpop.permute.xlu0 %366
        %370 = vset.pattern.permute.xlu0 0
        %371 = vperm.xlu0 %370, %v362
        %v372 = vpop.permute.xlu0 %371
        %v375 = vlaneseq
        %v376 = vshrl.u32 %v375, 7
        %v377 = vsub.s32 0, %v376
        %v378 = vrot.slane %v363, %v377
        %v380 = vmul.f32 %v367, %v378
        %v381 = vmul.f32 %v372, %v378
        %v382 = vld [vmem:[%s301] sm:$0xff]
        %v383 = vld [vmem:[%s301 + $0x8] sm:$0xff]
        %vm384 = vcmask 130048
        %v386 = vsel %vm384, %v357, 0
        %v389 = vsel %vm384, %v358, 0
        %391 = vmatprep.subr.mxu0 0.0
        %392 = vmatpush1.msra.mxu0 0.0
        %393 = vmatprep.subr.mxu0 0.0
        %394 = vmatpush1.msra.mxu0 0.0
        %395 = vmatprep.subr.mxu0 0.0
        %396 = vmatpush1.msra.mxu0 0.0
        %397 = vmatprep.subr.mxu0 0.0
        %398 = vmatpush1.msra.mxu0 0.0
        %399 = vmatprep.subr.mxu0 0.0
        %400 = vmatpush1.msra.mxu0 0.0
        %401 = vmatprep.subr.mxu0 0.0
        %402 = vmatpush1.msra.mxu0 0.0
        %403 = vmatprep.subr.mxu0 0.0
        %404 = vmatpush1.msra.mxu0 0.0
        %405 = vmatprep.subr.mxu0 0.0
        %406 = vmatpush1.msra.mxu0 0.0
        %407 = vmatprep.subr.mxu0 0.0
        %408 = vmatpush1.msra.mxu0 0.0
        %409 = vmatprep.subr.mxu0 0.0
        %410 = vmatpush1.msra.mxu0 0.0
        %411 = vmatprep.subr.mxu0 0.0
        %412 = vmatpush1.msra.mxu0 0.0
        %413 = vmatprep.subr.mxu0 0.0
        %414 = vmatpush1.msra.mxu0 0.0
        %415 = vmatprep.subr.mxu0 0.0
        %416 = vmatpush1.msra.mxu0 0.0
        %417 = vmatprep.subr.mxu0 0.0
        %418 = vmatpush1.msra.mxu0 0.0
        %419 = vmatprep.subr.mxu0 0.0
        %420 = vmatpush1.msra.mxu0 %v383
        %421 = vmatprep.subr.mxu0 0.0
        %422 = vmatpush1.msra.mxu0 %v382
        %423 = vmatprep.subr.mxu0 0.0
        %424 = vmatpush2.msra.mxu0 0.0
        %425 = vmatprep.subr.mxu0 0.0
        %426 = vmatpush2.msra.mxu0 0.0
        %427 = vmatprep.subr.mxu0 0.0
        %428 = vmatpush2.msra.mxu0 0.0
        %429 = vmatprep.subr.mxu0 0.0
        %430 = vmatpush2.msra.mxu0 0.0
        %431 = vmatprep.subr.mxu0 0.0
        %432 = vmatpush2.msra.mxu0 0.0
        %433 = vmatprep.subr.mxu0 0.0
        %434 = vmatpush2.msra.mxu0 0.0
        %435 = vmatprep.subr.mxu0 0.0
        %436 = vmatpush2.msra.mxu0 0.0
        %437 = vmatprep.subr.mxu0 0.0
        %438 = vmatpush2.msra.mxu0 0.0
        %439 = vmatprep.subr.mxu0 0.0
        %440 = vmatpush2.msra.mxu0 0.0
        %441 = vmatprep.subr.mxu0 0.0
        %442 = vmatpush2.msra.mxu0 0.0
        %443 = vmatprep.subr.mxu0 0.0
        %444 = vmatpush2.msra.mxu0 0.0
        %445 = vmatprep.subr.mxu0 0.0
        %446 = vmatpush2.msra.mxu0 0.0
        %447 = vmatprep.subr.mxu0 0.0
        %448 = vmatpush2.msra.mxu0 0.0
        %449 = vmatprep.subr.mxu0 0.0
        %450 = vmatpush2.msra.mxu0 0.0
        %451 = vmatprep.subr.mxu0 0.0
        %452 = vmatpush2.msra.mxu0 0.0
        %453 = vmatprep.subr.mxu0 0.0
        %454 = vmatpush2.msra.mxu0 0.0
        %455 = vmatprep.mubr.f32.mxu0 0.0
        %456 = vmatmul.mubr.f32.gmra.mxu0 %v386
        %v457 = vpop.f32.mrf.mxu0
        %v458 = vadd.f32 0.0, %v457
        %v459 = vpop.f32.mrf.mxu0
        %460 = vmatprep.mubr.f32.mxu0 0.0
        %461 = vmatmul.mubr.f32.gmra.mxu0 %v389
        %v462 = vpop.f32.mrf.mxu0
        %v463 = vadd.f32 0.0, %v462
        %v464 = vpop.f32.mrf.mxu0
        %465 = vdwg.mxu0
        %v466 = vadd.f32 %v380, %v458
        %v467 = vadd.f32 %v381, %v463
        %468 = vset.pattern.permute.xlu0 1
        %469 = vperm.xlu0 %468, %v361
        %v470 = vpop.permute.xlu0 %469
        %472 = vset.pattern.permute.xlu0 1
        %473 = vperm.xlu0 %472, %v362
        %v474 = vpop.permute.xlu0 %473
        %v476 = vadd.f32 %v466, %v470
        %v477 = vadd.f32 %v467, %v474
        %v478 = vmax.f32 %v476, 0.0
        %v479 = vmax.f32 %v477, 0.0
        %480 = vset.pattern.permute.xlu0 2
        %481 = vperm.xlu0 %480, %v361
        %v482 = vpop.permute.xlu0 %481
        %484 = vset.pattern.permute.xlu0 2
        %485 = vperm.xlu0 %484, %v362
        %v486 = vpop.permute.xlu0 %485
        %v489 = vsel %vm384, %v359, 0
        %v492 = vsel %vm384, %v360, 0
        %494 = vmatprep.subr.mxu0 0.0
        %495 = vmatpush1.msra.mxu0 0.0
        %496 = vmatprep.subr.mxu0 0.0
        %497 = vmatpush1.msra.mxu0 0.0
        %498 = vmatprep.subr.mxu0 0.0
        %499 = vmatpush1.msra.mxu0 0.0
        %500 = vmatprep.subr.mxu0 0.0
        %501 = vmatpush1.msra.mxu0 0.0
        %502 = vmatprep.subr.mxu0 0.0
        %503 = vmatpush1.msra.mxu0 0.0
        %504 = vmatprep.subr.mxu0 0.0
        %505 = vmatpush1.msra.mxu0 0.0
        %506 = vmatprep.subr.mxu0 0.0
        %507 = vmatpush1.msra.mxu0 0.0
        %508 = vmatprep.subr.mxu0 0.0
        %509 = vmatpush1.msra.mxu0 0.0
        %510 = vmatprep.subr.mxu0 0.0
        %511 = vmatpush1.msra.mxu0 0.0
        %512 = vmatprep.subr.mxu0 0.0
        %513 = vmatpush1.msra.mxu0 0.0
        %514 = vmatprep.subr.mxu0 0.0
        %515 = vmatpush1.msra.mxu0 0.0
        %516 = vmatprep.subr.mxu0 0.0
        %517 = vmatpush1.msra.mxu0 0.0
        %518 = vmatprep.subr.mxu0 0.0
        %519 = vmatpush1.msra.mxu0 0.0
        %520 = vmatprep.subr.mxu0 0.0
        %521 = vmatpush1.msra.mxu0 0.0
        %522 = vmatprep.subr.mxu0 0.0
        %523 = vmatpush1.msra.mxu0 %v479
        %524 = vmatprep.subr.mxu0 0.0
        %525 = vmatpush1.msra.mxu0 %v478
        %526 = vmatprep.subr.mxu0 0.0
        %527 = vmatpush2.msra.mxu0 0.0
        %528 = vmatprep.subr.mxu0 0.0
        %529 = vmatpush2.msra.mxu0 0.0
        %530 = vmatprep.subr.mxu0 0.0
        %531 = vmatpush2.msra.mxu0 0.0
        %532 = vmatprep.subr.mxu0 0.0
        %533 = vmatpush2.msra.mxu0 0.0
        %534 = vmatprep.subr.mxu0 0.0
        %535 = vmatpush2.msra.mxu0 0.0
        %536 = vmatprep.subr.mxu0 0.0
        %537 = vmatpush2.msra.mxu0 0.0
        %538 = vmatprep.subr.mxu0 0.0
        %539 = vmatpush2.msra.mxu0 0.0
        %540 = vmatprep.subr.mxu0 0.0
        %541 = vmatpush2.msra.mxu0 0.0
        %542 = vmatprep.subr.mxu0 0.0
        %543 = vmatpush2.msra.mxu0 0.0
        %544 = vmatprep.subr.mxu0 0.0
        %545 = vmatpush2.msra.mxu0 0.0
        %546 = vmatprep.subr.mxu0 0.0
        %547 = vmatpush2.msra.mxu0 0.0
        %548 = vmatprep.subr.mxu0 0.0
        %549 = vmatpush2.msra.mxu0 0.0
        %550 = vmatprep.subr.mxu0 0.0
        %551 = vmatpush2.msra.mxu0 0.0
        %552 = vmatprep.subr.mxu0 0.0
        %553 = vmatpush2.msra.mxu0 0.0
        %554 = vmatprep.subr.mxu0 0.0
        %555 = vmatpush2.msra.mxu0 0.0
        %556 = vmatprep.subr.mxu0 0.0
        %557 = vmatpush2.msra.mxu0 0.0
        %558 = vmatprep.mubr.f32.mxu0 0.0
        %559 = vmatmul.mubr.f32.gmra.mxu0 %v489
        %v560 = vpop.f32.mrf.mxu0
        %v561 = vadd.f32 %v482, %v560
        %v562 = vpop.f32.mrf.mxu0
        %563 = vmatprep.mubr.f32.mxu0 0.0
        %564 = vmatmul.mubr.f32.gmra.mxu0 %v492
        %v565 = vpop.f32.mrf.mxu0
        %v566 = vadd.f32 %v486, %v565
        %v567 = vpop.f32.mrf.mxu0
        %568 = vdwg.mxu0
        %v569 = vld [vmem:[%s346] sm:$0xff]
        %v570 = vld [vmem:[%s346 + $0x8] sm:$0xff]
        %v571 = vld [vmem:[%s346 + $0x10] sm:$0xff]
        %v572 = vld [vmem:[%s346 + $0x18] sm:$0xff]
        %v573 = vld [vmem:[%s346 + $0x20] sm:$0xff]
        %v574 = vld [vmem:[%s346 + $0x28] sm:$0xff]
        %v575 = vld [vmem:[%s346 + $0x30] sm:$0xff]
        %v576 = vld [vmem:[%s346 + $0x38] sm:$0xff]
        %v577 = vld [vmem:[%s346 + $0x40] sm:$0xff]
        %v578 = vld [vmem:[%s346 + $0x48] sm:$0xff]
        %v579 = vld [vmem:[%s346 + $0x50] sm:$0xff]
        %v580 = vld [vmem:[%s346 + $0x58] sm:$0xff]
        %v581 = vld [vmem:[%s346 + $0x60] sm:$0xff]
        %v582 = vld [vmem:[%s346 + $0x68] sm:$0xff]
        %v583 = vld [vmem:[%s346 + $0x70] sm:$0xff]
        %v584 = vld [vmem:[%s346 + $0x78] sm:$0xff]
        %s585 = smul.u32 %s24, 128
        %v586 = vstv %s585
        %v587 = vsub.s32 %v569, %v586
        %v588 = vsub.s32 %v570, %v586
        %v589 = vsub.s32 %v571, %v586
        %v590 = vsub.s32 %v572, %v586
        %v591 = vsub.s32 %v573, %v586
        %v592 = vsub.s32 %v574, %v586
        %v593 = vsub.s32 %v575, %v586
        %v594 = vsub.s32 %v576, %v586
        %v595 = vsub.s32 %v577, %v586
        %v596 = vsub.s32 %v578, %v586
        %v597 = vsub.s32 %v579, %v586
        %v598 = vsub.s32 %v580, %v586
        %v599 = vsub.s32 %v581, %v586
        %v600 = vsub.s32 %v582, %v586
        %v601 = vsub.s32 %v583, %v586
        %v602 = vsub.s32 %v584, %v586
        %v603 = vlaneseq
        %v604 = vand.u32 %v603, 127
        %605 = vset.pattern.permute.xlu0 0
        %606 = vperm.xlu0 %605, %v587
        %v607 = vpop.permute.xlu0 %606
        %608 = vset.pattern.permute.xlu0 0
        %609 = vperm.xlu0 %608, %v588
        %v610 = vpop.permute.xlu0 %609
        %611 = vset.pattern.permute.xlu0 0
        %612 = vperm.xlu0 %611, %v589
        %v613 = vpop.permute.xlu0 %612
        %614 = vset.pattern.permute.xlu0 0
        %615 = vperm.xlu0 %614, %v590
        %v616 = vpop.permute.xlu0 %615
        %617 = vset.pattern.permute.xlu0 0
        %618 = vperm.xlu0 %617, %v591
        %v619 = vpop.permute.xlu0 %618
        %620 = vset.pattern.permute.xlu0 0
        %621 = vperm.xlu0 %620, %v592
        %v622 = vpop.permute.xlu0 %621
        %623 = vset.pattern.permute.xlu0 0
        %624 = vperm.xlu0 %623, %v593
        %v625 = vpop.permute.xlu0 %624
        %626 = vset.pattern.permute.xlu0 0
        %627 = vperm.xlu0 %626, %v594
        %v628 = vpop.permute.xlu0 %627
        %629 = vset.pattern.permute.xlu0 0
        %630 = vperm.xlu0 %629, %v595
        %v631 = vpop.permute.xlu0 %630
        %632 = vset.pattern.permute.xlu0 0
        %633 = vperm.xlu0 %632, %v596
        %v634 = vpop.permute.xlu0 %633
        %635 = vset.pattern.permute.xlu0 0
        %636 = vperm.xlu0 %635, %v597
        %v637 = vpop.permute.xlu0 %636
        %638 = vset.pattern.permute.xlu0 0
        %639 = vperm.xlu0 %638, %v598
        %v640 = vpop.permute.xlu0 %639
        %641 = vset.pattern.permute.xlu0 0
        %642 = vperm.xlu0 %641, %v599
        %v643 = vpop.permute.xlu0 %642
        %644 = vset.pattern.permute.xlu0 0
        %645 = vperm.xlu0 %644, %v600
        %v646 = vpop.permute.xlu0 %645
        %647 = vset.pattern.permute.xlu0 0
        %648 = vperm.xlu0 %647, %v601
        %v649 = vpop.permute.xlu0 %648
        %650 = vset.pattern.permute.xlu0 0
        %651 = vperm.xlu0 %650, %v602
        %v652 = vpop.permute.xlu0 %651
        %vm653 = vcmp.eq.s32.totalorder %v607, %v604
        %vm654 = vcmp.eq.s32.totalorder %v610, %v604
        %vm655 = vcmp.eq.s32.totalorder %v613, %v604
        %vm656 = vcmp.eq.s32.totalorder %v616, %v604
        %vm657 = vcmp.eq.s32.totalorder %v619, %v604
        %vm658 = vcmp.eq.s32.totalorder %v622, %v604
        %vm659 = vcmp.eq.s32.totalorder %v625, %v604
        %vm660 = vcmp.eq.s32.totalorder %v628, %v604
        %vm661 = vcmp.eq.s32.totalorder %v631, %v604
        %vm662 = vcmp.eq.s32.totalorder %v634, %v604
        %vm663 = vcmp.eq.s32.totalorder %v637, %v604
        %vm664 = vcmp.eq.s32.totalorder %v640, %v604
        %vm665 = vcmp.eq.s32.totalorder %v643, %v604
        %vm666 = vcmp.eq.s32.totalorder %v646, %v604
        %vm667 = vcmp.eq.s32.totalorder %v649, %v604
        %vm668 = vcmp.eq.s32.totalorder %v652, %v604
        %v669 = vsel %vm653, 1, 0
        %v670 = vsel %vm654, 1, 0
        %v671 = vsel %vm655, 1, 0
        %v672 = vsel %vm656, 1, 0
        %v673 = vsel %vm657, 1, 0
        %v674 = vsel %vm658, 1, 0
        %v675 = vsel %vm659, 1, 0
        %v676 = vsel %vm660, 1, 0
        %v677 = vsel %vm661, 1, 0
        %v678 = vsel %vm662, 1, 0
        %v679 = vsel %vm663, 1, 0
        %v680 = vsel %vm664, 1, 0
        %v681 = vsel %vm665, 1, 0
        %v682 = vsel %vm666, 1, 0
        %v683 = vsel %vm667, 1, 0
        %v684 = vsel %vm668, 1, 0
        %v685 = vcvt.s32.f32 %v669
        %v686 = vcvt.s32.f32 %v670
        %v687 = vcvt.s32.f32 %v671
        %v688 = vcvt.s32.f32 %v672
        %v689 = vcvt.s32.f32 %v673
        %v690 = vcvt.s32.f32 %v674
        %v691 = vcvt.s32.f32 %v675
        %v692 = vcvt.s32.f32 %v676
        %v693 = vcvt.s32.f32 %v677
        %v694 = vcvt.s32.f32 %v678
        %v695 = vcvt.s32.f32 %v679
        %v696 = vcvt.s32.f32 %v680
        %v697 = vcvt.s32.f32 %v681
        %v698 = vcvt.s32.f32 %v682
        %v699 = vcvt.s32.f32 %v683
        %v700 = vcvt.s32.f32 %v684
        %v701 = vld [vmem:[#allocation2] sm:$0xff]
        %v702 = vld [vmem:[#allocation2 + $0x8] sm:$0xff]
        %703 = vmatprep.subr.mxu0 0.0
        %704 = vmatpush1.msra.mxu0 %v700
        %705 = vmatprep.subr.mxu0 0.0
        %706 = vmatpush1.msra.mxu0 %v699
        %707 = vmatprep.subr.mxu0 0.0
        %708 = vmatpush1.msra.mxu0 %v698
        %709 = vmatprep.subr.mxu0 0.0
        %710 = vmatpush1.msra.mxu0 %v697
        %711 = vmatprep.subr.mxu0 0.0
        %712 = vmatpush1.msra.mxu0 %v696
        %713 = vmatprep.subr.mxu0 0.0
        %714 = vmatpush1.msra.mxu0 %v695
        %715 = vmatprep.subr.mxu0 0.0
        %716 = vmatpush1.msra.mxu0 %v694
        %717 = vmatprep.subr.mxu0 0.0
        %718 = vmatpush1.msra.mxu0 %v693
        %719 = vmatprep.subr.mxu0 0.0
        %720 = vmatpush1.msra.mxu0 %v692
        %721 = vmatprep.subr.mxu0 0.0
        %722 = vmatpush1.msra.mxu0 %v691
        %723 = vmatprep.subr.mxu0 0.0
        %724 = vmatpush1.msra.mxu0 %v690
        %725 = vmatprep.subr.mxu0 0.0
        %726 = vmatpush1.msra.mxu0 %v689
        %727 = vmatprep.subr.mxu0 0.0
        %728 = vmatpush1.msra.mxu0 %v688
        %729 = vmatprep.subr.mxu0 0.0
        %730 = vmatpush1.msra.mxu0 %v687
        %731 = vmatprep.subr.mxu0 0.0
        %732 = vmatpush1.msra.mxu0 %v686
        %733 = vmatprep.subr.mxu0 0.0
        %734 = vmatpush1.msra.mxu0 %v685
        %735 = vmatprep.subr.mxu0 0.0
        %736 = vmatpush2.msra.mxu0 0.0
        %737 = vmatprep.subr.mxu0 0.0
        %738 = vmatpush2.msra.mxu0 0.0
        %739 = vmatprep.subr.mxu0 0.0
        %740 = vmatpush2.msra.mxu0 0.0
        %741 = vmatprep.subr.mxu0 0.0
        %742 = vmatpush2.msra.mxu0 0.0
        %743 = vmatprep.subr.mxu0 0.0
        %744 = vmatpush2.msra.mxu0 0.0
        %745 = vmatprep.subr.mxu0 0.0
        %746 = vmatpush2.msra.mxu0 0.0
        %747 = vmatprep.subr.mxu0 0.0
        %748 = vmatpush2.msra.mxu0 0.0
        %749 = vmatprep.subr.mxu0 0.0
        %750 = vmatpush2.msra.mxu0 0.0
        %751 = vmatprep.subr.mxu0 0.0
        %752 = vmatpush2.msra.mxu0 0.0
        %753 = vmatprep.subr.mxu0 0.0
        %754 = vmatpush2.msra.mxu0 0.0
        %755 = vmatprep.subr.mxu0 0.0
        %756 = vmatpush2.msra.mxu0 0.0
        %757 = vmatprep.subr.mxu0 0.0
        %758 = vmatpush2.msra.mxu0 0.0
        %759 = vmatprep.subr.mxu0 0.0
        %760 = vmatpush2.msra.mxu0 0.0
        %761 = vmatprep.subr.mxu0 0.0
        %762 = vmatpush2.msra.mxu0 0.0
        %763 = vmatprep.subr.mxu0 0.0
        %764 = vmatpush2.msra.mxu0 0.0
        %765 = vmatprep.subr.mxu0 0.0
        %766 = vmatpush2.msra.mxu0 0.0
        %767 = vmatprep.mubr.f32.mxu0 0.0
        %768 = vmatmul.mubr.f32.gmra.mxu0 %v561
        %v769 = vpop.f32.mrf.mxu0
        %v770 = vadd.f32 0.0, %v769
        %v771 = vpop.f32.mrf.mxu0
        %772 = vmatprep.mubr.f32.mxu0 0.0
        %773 = vmatmul.mubr.f32.gmra.mxu0 %v566
        %v774 = vpop.f32.mrf.mxu0
        %v775 = vadd.f32 0.0, %v774
        %v776 = vpop.f32.mrf.mxu0
        %777 = vdwg.mxu0
        %v778 = vadd.f32 %v701, %v770
        %v779 = vadd.f32 %v702, %v775
        %780 = vst [vmem:[#allocation2] sm:$0xff] %v778
        %781 = vst [vmem:[#allocation2 + $0x8] sm:$0xff] %v779
        %p782 = scmp.eq.s32.totalorder %s25, 1
        // Predicated region
        $region87: #{tpu_custom_call.1} parent=77 // pred_check
          %p783 = pneg %p782
        $region88: #{tpu_custom_call.1} parent=77 // pred_check_branch
          %785 = sbr.rel (%p783) target = $region90
        $region89: #{tpu_custom_call.1} parent=77 // pred_region
          %v786 = vld [vmem:[%s4 + $0x20] sm:$0xff]
          %v787 = vld [vmem:[%s4 + $0x28] sm:$0xff]
          %v788 = vld [vmem:[%s4 + $0x30] sm:$0xff]
          %v789 = vld [vmem:[%s4 + $0x38] sm:$0xff]
          %v790 = vld [vmem:[#allocation2] sm:$0xff]
          %v791 = vld [vmem:[#allocation2 + $0x8] sm:$0xff]
          %v792 = vmax.f32 %v791, 1.0
          %v793 = vlaneseq
          %v794 = vshrl.u32 %v793, 7
          %v795 = vsub.s32 6, %v794
          %v796 = vrot.slane %v792, %v795
          %v797 = vrcp.pop %v796
          %v798 = vmul.f32 %v790, %v797
          %v799 = vmul.f32 %v791, %v797
          %v800 = vld [vmem:[%s350] sm:$0x1]
          %801 = vset.pattern.permute.xlu0 3
          %802 = vperm.xlu0 %801, %v361
          %v803 = vpop.permute.xlu0 %802
          %805 = vset.pattern.permute.xlu0 3
          %806 = vperm.xlu0 %805, %v362
          %v807 = vpop.permute.xlu0 %806
          %v810 = vlaneseq
          %v811 = vshrl.u32 %v810, 7
          %v812 = vsub.s32 0, %v811
          %v813 = vrot.slane %v800, %v812
          %v815 = vmul.f32 %v803, %v813
          %v816 = vmul.f32 %v807, %v813
          %v818 = vsel %vm384, %v786, 0
          %v821 = vsel %vm384, %v787, 0
          %823 = vmatprep.subr.mxu0 0.0
          %824 = vmatpush1.msra.mxu0 0.0
          %825 = vmatprep.subr.mxu0 0.0
          %826 = vmatpush1.msra.mxu0 0.0
          %827 = vmatprep.subr.mxu0 0.0
          %828 = vmatpush1.msra.mxu0 0.0
          %829 = vmatprep.subr.mxu0 0.0
          %830 = vmatpush1.msra.mxu0 0.0
          %831 = vmatprep.subr.mxu0 0.0
          %832 = vmatpush1.msra.mxu0 0.0
          %833 = vmatprep.subr.mxu0 0.0
          %834 = vmatpush1.msra.mxu0 0.0
          %835 = vmatprep.subr.mxu0 0.0
          %836 = vmatpush1.msra.mxu0 0.0
          %837 = vmatprep.subr.mxu0 0.0
          %838 = vmatpush1.msra.mxu0 0.0
          %839 = vmatprep.subr.mxu0 0.0
          %840 = vmatpush1.msra.mxu0 0.0
          %841 = vmatprep.subr.mxu0 0.0
          %842 = vmatpush1.msra.mxu0 0.0
          %843 = vmatprep.subr.mxu0 0.0
          %844 = vmatpush1.msra.mxu0 0.0
          %845 = vmatprep.subr.mxu0 0.0
          %846 = vmatpush1.msra.mxu0 0.0
          %847 = vmatprep.subr.mxu0 0.0
          %848 = vmatpush1.msra.mxu0 0.0
          %849 = vmatprep.subr.mxu0 0.0
          %850 = vmatpush1.msra.mxu0 0.0
          %851 = vmatprep.subr.mxu0 0.0
          %852 = vmatpush1.msra.mxu0 %v799
          %853 = vmatprep.subr.mxu0 0.0
          %854 = vmatpush1.msra.mxu0 %v798
          %855 = vmatprep.subr.mxu0 0.0
          %856 = vmatpush2.msra.mxu0 0.0
          %857 = vmatprep.subr.mxu0 0.0
          %858 = vmatpush2.msra.mxu0 0.0
          %859 = vmatprep.subr.mxu0 0.0
          %860 = vmatpush2.msra.mxu0 0.0
          %861 = vmatprep.subr.mxu0 0.0
          %862 = vmatpush2.msra.mxu0 0.0
          %863 = vmatprep.subr.mxu0 0.0
          %864 = vmatpush2.msra.mxu0 0.0
          %865 = vmatprep.subr.mxu0 0.0
          %866 = vmatpush2.msra.mxu0 0.0
          %867 = vmatprep.subr.mxu0 0.0
          %868 = vmatpush2.msra.mxu0 0.0
          %869 = vmatprep.subr.mxu0 0.0
          %870 = vmatpush2.msra.mxu0 0.0
          %871 = vmatprep.subr.mxu0 0.0
          %872 = vmatpush2.msra.mxu0 0.0
          %873 = vmatprep.subr.mxu0 0.0
          %874 = vmatpush2.msra.mxu0 0.0
          %875 = vmatprep.subr.mxu0 0.0
          %876 = vmatpush2.msra.mxu0 0.0
          %877 = vmatprep.subr.mxu0 0.0
          %878 = vmatpush2.msra.mxu0 0.0
          %879 = vmatprep.subr.mxu0 0.0
          %880 = vmatpush2.msra.mxu0 0.0
          %881 = vmatprep.subr.mxu0 0.0
          %882 = vmatpush2.msra.mxu0 0.0
          %883 = vmatprep.subr.mxu0 0.0
          %884 = vmatpush2.msra.mxu0 0.0
          %885 = vmatprep.subr.mxu0 0.0
          %886 = vmatpush2.msra.mxu0 0.0
          %887 = vmatprep.mubr.f32.mxu0 0.0
          %888 = vmatmul.mubr.f32.gmra.mxu0 %v818
          %v889 = vpop.f32.mrf.mxu0
          %v890 = vadd.f32 0.0, %v889
          %v891 = vpop.f32.mrf.mxu0
          %892 = vmatprep.mubr.f32.mxu0 0.0
          %893 = vmatmul.mubr.f32.gmra.mxu0 %v821
          %v894 = vpop.f32.mrf.mxu0
          %v895 = vadd.f32 0.0, %v894
          %v896 = vpop.f32.mrf.mxu0
          %897 = vdwg.mxu0
          %v898 = vadd.f32 %v815, %v890
          %v899 = vadd.f32 %v816, %v895
          %900 = vset.pattern.permute.xlu0 4
          %901 = vperm.xlu0 %900, %v361
          %v902 = vpop.permute.xlu0 %901
          %904 = vset.pattern.permute.xlu0 4
          %905 = vperm.xlu0 %904, %v362
          %v906 = vpop.permute.xlu0 %905
          %v908 = vadd.f32 %v898, %v902
          %v909 = vadd.f32 %v899, %v906
          %v910 = vmax.f32 %v908, 0.0
          %v911 = vmax.f32 %v909, 0.0
          %912 = vset.pattern.permute.xlu0 5
          %913 = vperm.xlu0 %912, %v361
          %v914 = vpop.permute.xlu0 %913
          %916 = vset.pattern.permute.xlu0 5
          %917 = vperm.xlu0 %916, %v362
          %v918 = vpop.permute.xlu0 %917
          %v921 = vsel %vm384, %v788, 0
          %v924 = vsel %vm384, %v789, 0
          %926 = vmatprep.subr.mxu0 0.0
          %927 = vmatpush1.msra.mxu0 0.0
          %928 = vmatprep.subr.mxu0 0.0
          %929 = vmatpush1.msra.mxu0 0.0
          %930 = vmatprep.subr.mxu0 0.0
          %931 = vmatpush1.msra.mxu0 0.0
          %932 = vmatprep.subr.mxu0 0.0
          %933 = vmatpush1.msra.mxu0 0.0
          %934 = vmatprep.subr.mxu0 0.0
          %935 = vmatpush1.msra.mxu0 0.0
          %936 = vmatprep.subr.mxu0 0.0
          %937 = vmatpush1.msra.mxu0 0.0
          %938 = vmatprep.subr.mxu0 0.0
          %939 = vmatpush1.msra.mxu0 0.0
          %940 = vmatprep.subr.mxu0 0.0
          %941 = vmatpush1.msra.mxu0 0.0
          %942 = vmatprep.subr.mxu0 0.0
          %943 = vmatpush1.msra.mxu0 0.0
          %944 = vmatprep.subr.mxu0 0.0
          %945 = vmatpush1.msra.mxu0 0.0
          %946 = vmatprep.subr.mxu0 0.0
          %947 = vmatpush1.msra.mxu0 0.0
          %948 = vmatprep.subr.mxu0 0.0
          %949 = vmatpush1.msra.mxu0 0.0
          %950 = vmatprep.subr.mxu0 0.0
          %951 = vmatpush1.msra.mxu0 0.0
          %952 = vmatprep.subr.mxu0 0.0
          %953 = vmatpush1.msra.mxu0 0.0
          %954 = vmatprep.subr.mxu0 0.0
          %955 = vmatpush1.msra.mxu0 %v911
          %956 = vmatprep.subr.mxu0 0.0
          %957 = vmatpush1.msra.mxu0 %v910
          %958 = vmatprep.subr.mxu0 0.0
          %959 = vmatpush2.msra.mxu0 0.0
          %960 = vmatprep.subr.mxu0 0.0
          %961 = vmatpush2.msra.mxu0 0.0
          %962 = vmatprep.subr.mxu0 0.0
          %963 = vmatpush2.msra.mxu0 0.0
          %964 = vmatprep.subr.mxu0 0.0
          %965 = vmatpush2.msra.mxu0 0.0
          %966 = vmatprep.subr.mxu0 0.0
          %967 = vmatpush2.msra.mxu0 0.0
          %968 = vmatprep.subr.mxu0 0.0
          %969 = vmatpush2.msra.mxu0 0.0
          %970 = vmatprep.subr.mxu0 0.0
          %971 = vmatpush2.msra.mxu0 0.0
          %972 = vmatprep.subr.mxu0 0.0
          %973 = vmatpush2.msra.mxu0 0.0
          %974 = vmatprep.subr.mxu0 0.0
          %975 = vmatpush2.msra.mxu0 0.0
          %976 = vmatprep.subr.mxu0 0.0
          %977 = vmatpush2.msra.mxu0 0.0
          %978 = vmatprep.subr.mxu0 0.0
          %979 = vmatpush2.msra.mxu0 0.0
          %980 = vmatprep.subr.mxu0 0.0
          %981 = vmatpush2.msra.mxu0 0.0
          %982 = vmatprep.subr.mxu0 0.0
          %983 = vmatpush2.msra.mxu0 0.0
          %984 = vmatprep.subr.mxu0 0.0
          %985 = vmatpush2.msra.mxu0 0.0
          %986 = vmatprep.subr.mxu0 0.0
          %987 = vmatpush2.msra.mxu0 0.0
          %988 = vmatprep.subr.mxu0 0.0
          %989 = vmatpush2.msra.mxu0 0.0
          %990 = vmatprep.mubr.f32.mxu0 0.0
          %991 = vmatmul.mubr.f32.gmra.mxu0 %v921
          %v992 = vpop.f32.mrf.mxu0
          %v993 = vadd.f32 %v914, %v992
          %v994 = vpop.f32.mrf.mxu0
          %995 = vmatprep.mubr.f32.mxu0 0.0
          %996 = vmatmul.mubr.f32.gmra.mxu0 %v924
          %v997 = vpop.f32.mrf.mxu0
          %v998 = vadd.f32 %v918, %v997
          %v999 = vpop.f32.mrf.mxu0
          %1000 = vdwg.mxu0
          %1001 = vst [vmem:[%s338] sm:$0xff] %v993
          %1002 = vst [vmem:[%s338 + $0x8] sm:$0xff] %v998
        $region90: #{tpu_custom_call.1} parent=77 // pred_fallthru
          _
        %s1003 = sand.u32 %s186, 1
        %s1004 = scalar_lea.sflag [#allocation5], %s1003
        %s1005 = sand.u32 %s186, 1
        %s1006 = smul.addr %s1005, 16
        %s1007 = scalar_lea.vmem [#allocation4], %s1006
        // Predicated region
        $region91: #{tpu_custom_call.1} parent=77 // pred_check
          %p1008 = pneg %p196
        $region92: #{tpu_custom_call.1} parent=77 // pred_check_branch
          %1010 = sbr.rel (%p1008) target = $region94
        $region93: #{tpu_custom_call.1} parent=77 // pred_region
          %s1012 = ssub.s32 256, 256
          %1013 = vsyncadd %s1004, %s1012
          %s1014 = smul.addr %s24, 128
          %s1015 = scalar_lea.hbm %s6, %s1014
          %s1016 = sshll.u32 %s1007, 4
          %s1017 = int_to_ptr.vmem [resolvable:$true] %s1016
          %1022 = dma.vmem_to_hbm [thread:$0]  %s1017, 256, %s1015, %s1004, 128, 256, 8
        $region94: #{tpu_custom_call.1} parent=77 // pred_fallthru
          _
      $region78: #{tpu_custom_call.1} parent=5 // pred_fallthru
        _
      %p1023 = scmp.le.s32.totalorder 2, %s15
      // Predicated region
      $region95: #{tpu_custom_call.1} parent=5 // pred_check
        %p1024 = pneg %p1023
      $region96: #{tpu_custom_call.1} parent=5 // pred_check_branch
        %1026 = sbr.rel (%p1024) target = $region98
      $region97: #{tpu_custom_call.1} parent=5 // pred_region
        %s1027 = ssub.s32 %s15, 2
        // Predicated region
        $region99: #{tpu_custom_call.1} parent=97 // pred_check
          %p1028 = pneg %p202
        $region100: #{tpu_custom_call.1} parent=97 // pred_check_branch
          %1030 = sbr.rel (%p1028) target = $region102
        $region101: #{tpu_custom_call.1} parent=97 // pred_region
          %s1031 = sand.u32 %s187, 1
          %s1032 = scalar_lea.sflag [#allocation5], %s1031
          %s1033 = sand.u32 %s187, 1
          %s1034 = smul.addr %s1033, 16
          %s1035 = scalar_lea.vmem [#allocation4], %s1034
          %1036 = dma.done %s1032, 256
        $region102: #{tpu_custom_call.1} parent=97 // pred_fallthru
          _
      $region98: #{tpu_custom_call.1} parent=5 // pred_fallthru
        _
    $region6: #{tpu_custom_call.1} parent=1 // loop_footer
      %s19 = sadd.s32 1, %s15
    $region7: #{tpu_custom_call.1} parent=1 // loop_footer_branch
      %14 = sbr.rel target = $region3
    $region8: #{tpu_custom_call.1} parent=1 // loop_exit
      _
    %1037 = vsyncpa [#allocation5], 1
    %s1038 = scalar_lea.sflag [#allocation5], 1
    %1039 = vsyncpa %s1038, 1

</llo_original>
